<compile_context>
chip_gen: v7x
topology: tpu7x:2x2x1
jax: 0.10.0
libtpu: 0.0.40
codegen_flags: <defaults>
</compile_context>

<pallas_src>
import jax
import jax.numpy as jnp
from jax.experimental import pallas as pl
from jax.experimental.pallas import tpu as pltpu


def _round_up(x, m):
    return ((x + m - 1) // m) * m


def _multitask_loss_tile_kernel(crop_logits_ref, dis_logits_ref, aux_ref, out_ref):
    """One batch tile: emit raw per-tile sums [sum_nll_crop, sum_bce, sum_nll_dis]."""
    # aux lanes: 0 = det_pred, 1 = det_target, 2 = crop_label, 3 = disease_label, 4 = valid
    valid = aux_ref[:, 4:5]                                        # (TB, 1) f32

    # ---- CrossEntropy(crop_pred, crop_target), raw sum of per-row NLL ----
    logits = crop_logits_ref[...].astype(jnp.float32)              # (TB, Cc)
    crop_lbl = aux_ref[:, 2:3].astype(jnp.int32)                   # (TB, 1)
    col = jax.lax.broadcasted_iota(jnp.int32, logits.shape, 1)
    sel = jnp.sum(jnp.where(col == crop_lbl, logits, 0.0), axis=-1, keepdims=True)
    m = jnp.max(logits, axis=-1, keepdims=True)
    lse = m + jnp.log(jnp.sum(jnp.exp(logits - m), axis=-1, keepdims=True))
    nll_crop = (lse - sel) * valid                                 # (TB, 1)

    # ---- BCE(disease_detection_pred.view(-1), healthy), raw sum ----
    p = aux_ref[:, 0:1]
    t = aux_ref[:, 1:2]
    log_p = jnp.maximum(jnp.log(p), -100.0)                        # PyTorch BCELoss clamp
    log_1mp = jnp.maximum(jnp.log(1.0 - p), -100.0)
    bce = -(t * log_p + (1.0 - t) * log_1mp) * valid               # (TB, 1)

    # ---- CrossEntropy(disease_classification_pred, disease), raw sum ----
    dlogits = dis_logits_ref[...].astype(jnp.float32)              # (TB, Cd)
    dis_lbl = aux_ref[:, 3:4].astype(jnp.int32)
    dcol = jax.lax.broadcasted_iota(jnp.int32, dlogits.shape, 1)
    dsel = jnp.sum(jnp.where(dcol == dis_lbl, dlogits, 0.0), axis=-1, keepdims=True)
    dm = jnp.max(dlogits, axis=-1, keepdims=True)
    dlse = dm + jnp.log(jnp.sum(jnp.exp(dlogits - dm), axis=-1, keepdims=True))
    nll_dis = (dlse - dsel) * valid                                # (TB, 1)

    out_ref[:, 0:1] = jnp.sum(nll_crop, axis=0, keepdims=True)     # (1, 1)
    out_ref[:, 1:2] = jnp.sum(bce, axis=0, keepdims=True)
    out_ref[:, 2:3] = jnp.sum(nll_dis, axis=0, keepdims=True)


def multitask_loss(crop_pred, disease_detection_pred, disease_classification_pred,
                   crop_target, healthy_target, disease_target,
                   weight_crop=1.0, weight_disease_detection=1.0,
                   weight_disease_classification=1.0, block_rows=256):
    """Equivalent of MultiTaskLoss.forward(outputs, targets)."""
    B, c_crop = crop_pred.shape
    _, c_dis = disease_classification_pred.shape

    # --- tile sizing: multiples of 8 sublanes, bounded so tiles stay small in VMEM ---
    tb = min(block_rows, _round_up(B, 8))
    b_pad = _round_up(B, tb)
    num_tiles = b_pad // tb
    pad = b_pad - B

    # --- pack the per-row scalars into one lane-compact aux array (no one-hot) ---
    det_p = disease_detection_pred.reshape(-1).astype(jnp.float32)   # .view(-1)
    det_t = healthy_target.reshape(-1).astype(jnp.float32)
    aux = jnp.stack(
        [det_p, det_t,
         crop_target.astype(jnp.float32),
         disease_target.astype(jnp.float32),
         jnp.ones((B,), jnp.float32)],                               # valid flag
        axis=1)                                                      # (B, 5)

    crop_p = crop_pred                          # keep native dtype; upcast in-kernel
    dis_p = disease_classification_pred

    if pad:
        # padded rows: safe BCE operands (0.5), zero logits, label 0, valid = 0
        aux_pad = jnp.concatenate(
            [jnp.full((pad, 2), 0.5, jnp.float32), jnp.zeros((pad, 3), jnp.float32)],
            axis=1)
        aux = jnp.concatenate([aux, aux_pad], axis=0)
        crop_p = jnp.concatenate([crop_p, jnp.zeros((pad, c_crop), crop_p.dtype)], axis=0)
        dis_p = jnp.concatenate([dis_p, jnp.zeros((pad, c_dis), dis_p.dtype)], axis=0)

    bytes_accessed = int(crop_p.size * crop_p.dtype.itemsize
                         + dis_p.size * dis_p.dtype.itemsize
                         + aux.size * 4
                         + num_tiles * 3 * 4)
    cost = pl.CostEstimate(
        flops=int(6 * b_pad * (c_crop + c_dis) + 16 * b_pad),
        transcendentals=int(b_pad * (c_crop + c_dis) + 4 * b_pad),
        bytes_accessed=bytes_accessed)

    partials = pl.pallas_call(
        _multitask_loss_tile_kernel,
        out_shape=jax.ShapeDtypeStruct((num_tiles, 3), jnp.float32),
        grid=(num_tiles,),
        in_specs=[
            pl.BlockSpec((tb, c_crop), lambda i: (i, 0)),
            pl.BlockSpec((tb, c_dis), lambda i: (i, 0)),
            pl.BlockSpec((tb, 5), lambda i: (i, 0)),
        ],
        out_specs=pl.BlockSpec((1, 3), lambda i: (i, 0)),
        compiler_params=pltpu.CompilerParams(
            dimension_semantics=("parallel",)),
        cost_estimate=cost,
    )(crop_p, dis_p, aux)

    # tiny epilogue in plain JAX: reduce partials, divide by the true batch size,
    # apply the task weights (kernel itself is weight-independent -> no recompiles).
    sums = jnp.sum(partials, axis=0)            # [sum_nll_crop, sum_bce, sum_nll_dis]
    inv_b = jnp.float32(1.0 / B)
    total = (jnp.float32(weight_crop) * sums[0]
             + jnp.float32(weight_disease_detection) * sums[1]
             + jnp.float32(weight_disease_classification) * sums[2]) * inv_b
    return total


def _reference_loss(crop_pred, det_pred, dis_pred, crop_tgt, healthy_tgt, dis_tgt,
                    w1=1.0, w2=1.0, w3=1.0):
    def ce(logits, labels):
        logp = jax.nn.log_softmax(logits.astype(jnp.float32), axis=-1)
        return -jnp.mean(jnp.take_along_axis(logp, labels[:, None], axis=-1))
    p = det_pred.reshape(-1).astype(jnp.float32)
    bce = -jnp.mean(healthy_tgt * jnp.maximum(jnp.log(p), -100.0)
                    + (1.0 - healthy_tgt) * jnp.maximum(jnp.log(1.0 - p), -100.0))
    return w1 * ce(crop_pred, crop_tgt) + w2 * bce + w3 * ce(dis_pred, dis_tgt)


if __name__ == "__main__":
    key = jax.random.PRNGKey(0)
    k1, k2, k3, k4, k5, k6 = jax.random.split(key, 6)

    B, C_CROP, C_DIS = 8, 4, 6

    crop_pred = jax.random.normal(k1, (B, C_CROP), dtype=jnp.float32)
    disease_detection_pred = jax.nn.sigmoid(
        jax.random.normal(k2, (B, 1), dtype=jnp.float32))        # probabilities for BCE
    disease_classification_pred = jax.random.normal(k3, (B, C_DIS), dtype=jnp.float32)

    crop_target = jax.random.randint(k4, (B,), 0, C_CROP, dtype=jnp.int32)
    healthy_target = jax.random.bernoulli(k5, 0.5, (B,)).astype(jnp.float32)
    disease_target = jax.random.randint(k6, (B,), 0, C_DIS, dtype=jnp.int32)

    total = multitask_loss(crop_pred, disease_detection_pred, disease_classification_pred,
                           crop_target, healthy_target, disease_target,
                           weight_crop=1.0, weight_disease_detection=1.0,
                           weight_disease_classification=1.0)
    total = jax.block_until_ready(total)

    ref = _reference_loss(crop_pred, disease_detection_pred, disease_classification_pred,
                          crop_target, healthy_target, disease_target)
    assert jnp.allclose(total, ref, rtol=1e-5, atol=1e-5), (total, ref)

    # also exercise the non-divisible / padded-tile path on a batch that is not a
    # multiple of 8 and with non-unit weights
    B2 = 13
    j1, j2, j3, j4, j5, j6 = jax.random.split(jax.random.PRNGKey(1), 6)
    cp2 = jax.random.normal(j1, (B2, C_CROP), dtype=jnp.float32)
    dp2 = jax.nn.sigmoid(jax.random.normal(j2, (B2, 1), dtype=jnp.float32))
    dc2 = jax.random.normal(j3, (B2, C_DIS), dtype=jnp.float32)
    ct2 = jax.random.randint(j4, (B2,), 0, C_CROP, dtype=jnp.int32)
    ht2 = jax.random.bernoulli(j5, 0.5, (B2,)).astype(jnp.float32)
    dt2 = jax.random.randint(j6, (B2,), 0, C_DIS, dtype=jnp.int32)
    total2 = jax.block_until_ready(
        multitask_loss(cp2, dp2, dc2, ct2, ht2, dt2,
                       weight_crop=0.5, weight_disease_detection=2.0,
                       weight_disease_classification=1.5))
    ref2 = _reference_loss(cp2, dp2, dc2, ct2, ht2, dt2, w1=0.5, w2=2.0, w3=1.5)
    assert jnp.allclose(total2, ref2, rtol=1e-5, atol=1e-5), (total2, ref2)

    print("KERNEL_OK")
</pallas_src>

<mosaic_0001>
module attributes {stable_mosaic.version = 11 : i64} {
  func.func @_multitask_loss_tile_kernel(%arg0: i32, %arg1: memref<8x4xf32, #tpu.memory_space<vmem>>, %arg2: memref<8x6xf32, #tpu.memory_space<vmem>>, %arg3: memref<8x5xf32, #tpu.memory_space<vmem>>, %arg4: memref<1x3xf32, #tpu.memory_space<vmem>>) attributes {dimension_semantics = [#tpu.dimension_semantics<parallel>], iteration_bounds = array<i64: 1>, scalar_prefetch = 0 : i64, scratch_operands = 0 : i64, tpu.core_type = #tpu.core_type<tc>, window_params = [{transform_indices = @transform_0, window_bounds = array<i64: 8, 4>}, {transform_indices = @transform_1, window_bounds = array<i64: 8, 6>}, {transform_indices = @transform_2, window_bounds = array<i64: 8, 5>}, {transform_indices = @transform_3, window_bounds = array<i64: 1, 3>}]} {
    %c0 = arith.constant 0 : index
    %c4 = arith.constant 4 : index
    %0 = vector.load %arg3[%c0, %c4] : memref<8x5xf32, #tpu.memory_space<vmem>>, vector<8x1xf32>
    %c0_0 = arith.constant 0 : index
    %c0_1 = arith.constant 0 : index
    %1 = vector.load %arg1[%c0_0, %c0_1] : memref<8x4xf32, #tpu.memory_space<vmem>>, vector<8x4xf32>
    %c0_2 = arith.constant 0 : index
    %c2 = arith.constant 2 : index
    %2 = vector.load %arg3[%c0_2, %c2] : memref<8x5xf32, #tpu.memory_space<vmem>>, vector<8x1xf32>
    %3 = arith.fptosi %2 : vector<8x1xf32> to vector<8x1xi32>
    %4 = tpu.iota {dimensions = array<i32: 1>} : vector<8x4xi32>
    %5 = vector.broadcast %3 : vector<8x1xi32> to vector<8x4xi32>
    %6 = arith.cmpi eq, %4, %5 : vector<8x4xi32>
    %cst = arith.constant 0.000000e+00 : f32
    %7 = vector.broadcast %cst : f32 to vector<8x4xf32>
    %8 = arith.select %6, %1, %7 : vector<8x4xi1>, vector<8x4xf32>
    %cst_3 = arith.constant dense<0.000000e+00> : vector<8xf32>
    %9 = vector.multi_reduction <add>, %8, %cst_3 [1] : vector<8x4xf32> to vector<8xf32>
    %10 = vector.shape_cast %9 : vector<8xf32> to vector<8x1xf32>
    %cst_4 = arith.constant dense<0xFF800000> : vector<8xf32>
    %11 = vector.multi_reduction <maximumf>, %1, %cst_4 [1] : vector<8x4xf32> to vector<8xf32>
    %12 = vector.shape_cast %11 : vector<8xf32> to vector<8x1xf32>
    %13 = vector.broadcast %12 : vector<8x1xf32> to vector<8x4xf32>
    %14 = arith.subf %1, %13 : vector<8x4xf32>
    %15 = math.exp %14 : vector<8x4xf32>
    %cst_5 = arith.constant dense<0.000000e+00> : vector<8xf32>
    %16 = vector.multi_reduction <add>, %15, %cst_5 [1] : vector<8x4xf32> to vector<8xf32>
    %17 = vector.shape_cast %16 : vector<8xf32> to vector<8x1xf32>
    %18 = math.log %17 : vector<8x1xf32>
    %19 = arith.addf %12, %18 : vector<8x1xf32>
    %20 = arith.subf %19, %10 : vector<8x1xf32>
    %21 = arith.mulf %20, %0 : vector<8x1xf32>
    %c0_6 = arith.constant 0 : index
    %c0_7 = arith.constant 0 : index
    %22 = vector.load %arg3[%c0_6, %c0_7] : memref<8x5xf32, #tpu.memory_space<vmem>>, vector<8x1xf32>
    %c0_8 = arith.constant 0 : index
    %c1 = arith.constant 1 : index
    %23 = vector.load %arg3[%c0_8, %c1] : memref<8x5xf32, #tpu.memory_space<vmem>>, vector<8x1xf32>
    %24 = math.log %22 : vector<8x1xf32>
    %cst_9 = arith.constant -1.000000e+02 : f32
    %25 = vector.broadcast %cst_9 : f32 to vector<8x1xf32>
    %26 = arith.maximumf %24, %25 : vector<8x1xf32>
    %cst_10 = arith.constant 1.000000e+00 : f32
    %27 = vector.broadcast %cst_10 : f32 to vector<8x1xf32>
    %28 = arith.subf %27, %22 : vector<8x1xf32>
    %29 = math.log %28 : vector<8x1xf32>
    %cst_11 = arith.constant -1.000000e+02 : f32
    %30 = vector.broadcast %cst_11 : f32 to vector<8x1xf32>
    %31 = arith.maximumf %29, %30 : vector<8x1xf32>
    %32 = arith.mulf %23, %26 : vector<8x1xf32>
    %cst_12 = arith.constant 1.000000e+00 : f32
    %33 = vector.broadcast %cst_12 : f32 to vector<8x1xf32>
    %34 = arith.subf %33, %23 : vector<8x1xf32>
    %35 = arith.mulf %34, %31 : vector<8x1xf32>
    %36 = arith.addf %32, %35 : vector<8x1xf32>
    %cst_13 = arith.constant 0.000000e+00 : f32
    %37 = vector.broadcast %cst_13 : f32 to vector<8x1xf32>
    %38 = arith.subf %37, %36 : vector<8x1xf32>
    %39 = arith.mulf %38, %0 : vector<8x1xf32>
    %c0_14 = arith.constant 0 : index
    %c0_15 = arith.constant 0 : index
    %40 = vector.load %arg2[%c0_14, %c0_15] : memref<8x6xf32, #tpu.memory_space<vmem>>, vector<8x6xf32>
    %c0_16 = arith.constant 0 : index
    %c3 = arith.constant 3 : index
    %41 = vector.load %arg3[%c0_16, %c3] : memref<8x5xf32, #tpu.memory_space<vmem>>, vector<8x1xf32>
    %42 = arith.fptosi %41 : vector<8x1xf32> to vector<8x1xi32>
    %43 = tpu.iota {dimensions = array<i32: 1>} : vector<8x6xi32>
    %44 = vector.broadcast %42 : vector<8x1xi32> to vector<8x6xi32>
    %45 = arith.cmpi eq, %43, %44 : vector<8x6xi32>
    %cst_17 = arith.constant 0.000000e+00 : f32
    %46 = vector.broadcast %cst_17 : f32 to vector<8x6xf32>
    %47 = arith.select %45, %40, %46 : vector<8x6xi1>, vector<8x6xf32>
    %cst_18 = arith.constant dense<0.000000e+00> : vector<8xf32>
    %48 = vector.multi_reduction <add>, %47, %cst_18 [1] : vector<8x6xf32> to vector<8xf32>
    %49 = vector.shape_cast %48 : vector<8xf32> to vector<8x1xf32>
    %cst_19 = arith.constant dense<0xFF800000> : vector<8xf32>
    %50 = vector.multi_reduction <maximumf>, %40, %cst_19 [1] : vector<8x6xf32> to vector<8xf32>
    %51 = vector.shape_cast %50 : vector<8xf32> to vector<8x1xf32>
    %52 = vector.broadcast %51 : vector<8x1xf32> to vector<8x6xf32>
    %53 = arith.subf %40, %52 : vector<8x6xf32>
    %54 = math.exp %53 : vector<8x6xf32>
    %cst_20 = arith.constant dense<0.000000e+00> : vector<8xf32>
    %55 = vector.multi_reduction <add>, %54, %cst_20 [1] : vector<8x6xf32> to vector<8xf32>
    %56 = vector.shape_cast %55 : vector<8xf32> to vector<8x1xf32>
    %57 = math.log %56 : vector<8x1xf32>
    %58 = arith.addf %51, %57 : vector<8x1xf32>
    %59 = arith.subf %58, %49 : vector<8x1xf32>
    %60 = arith.mulf %59, %0 : vector<8x1xf32>
    %cst_21 = arith.constant dense<0.000000e+00> : vector<1xf32>
    %61 = vector.multi_reduction <add>, %21, %cst_21 [0] : vector<8x1xf32> to vector<1xf32>
    %62 = vector.shape_cast %61 : vector<1xf32> to vector<1x1xf32>
    %c0_22 = arith.constant 0 : index
    %c0_23 = arith.constant 0 : index
    %63 = vector.load %arg4[%c0_22, %c0_23] : memref<1x3xf32, #tpu.memory_space<vmem>>, vector<1x1xf32>
    tpu.vector_store %arg4[%c0_22, %c0_23], %62 {strides = array<i32>} : memref<1x3xf32, #tpu.memory_space<vmem>>, vector<1x1xf32>,
    %cst_24 = arith.constant dense<0.000000e+00> : vector<1xf32>
    %64 = vector.multi_reduction <add>, %39, %cst_24 [0] : vector<8x1xf32> to vector<1xf32>
    %65 = vector.shape_cast %64 : vector<1xf32> to vector<1x1xf32>
    %c0_25 = arith.constant 0 : index
    %c1_26 = arith.constant 1 : index
    %66 = vector.load %arg4[%c0_25, %c1_26] : memref<1x3xf32, #tpu.memory_space<vmem>>, vector<1x1xf32>
    tpu.vector_store %arg4[%c0_25, %c1_26], %65 {strides = array<i32>} : memref<1x3xf32, #tpu.memory_space<vmem>>, vector<1x1xf32>,
    %cst_27 = arith.constant dense<0.000000e+00> : vector<1xf32>
    %67 = vector.multi_reduction <add>, %60, %cst_27 [0] : vector<8x1xf32> to vector<1xf32>
    %68 = vector.shape_cast %67 : vector<1xf32> to vector<1x1xf32>
    %c0_28 = arith.constant 0 : index
    %c2_29 = arith.constant 2 : index
    %69 = vector.load %arg4[%c0_28, %c2_29] : memref<1x3xf32, #tpu.memory_space<vmem>>, vector<1x1xf32>
    tpu.vector_store %arg4[%c0_28, %c2_29], %68 {strides = array<i32>} : memref<1x3xf32, #tpu.memory_space<vmem>>, vector<1x1xf32>,
    return
  }
  func.func @transform_0(%arg0: i32) -> (i32, i32) {
    %c0_i32 = arith.constant 0 : i32
    %c0_i32_0 = arith.constant 0 : i32
    return %arg0, %c0_i32 : i32, i32
  }
  func.func @transform_1(%arg0: i32) -> (i32, i32) {
    %c0_i32 = arith.constant 0 : i32
    %c0_i32_0 = arith.constant 0 : i32
    return %arg0, %c0_i32 : i32, i32
  }
  func.func @transform_2(%arg0: i32) -> (i32, i32) {
    %c0_i32 = arith.constant 0 : i32
    %c0_i32_0 = arith.constant 0 : i32
    return %arg0, %c0_i32 : i32, i32
  }
  func.func @transform_3(%arg0: i32) -> (i32, i32) {
    %c0_i32 = arith.constant 0 : i32
    %c0_i32_0 = arith.constant 0 : i32
    return %arg0, %c0_i32 : i32, i32
  }
}

</mosaic_0001>

<llo_original>
// kernel: tpu_custom_call.1
$region0: #{tpu_custom_call.1}
  #allocation0 [shape = 'u32[]', space=smem, size = 0x4, offset = 0x4, fixed_abs, tag = 'smem constant byte address 0x4 - core index']
  #allocation1 [shape = 'u32[144,128]{1,0:T(1,128)}', space=vmem, size = 0x12000, scoped, tag = 'internal scratch']
  %s0 = inlined_call_operand.vmem [shape: f32[8,4], index: 0, kind: input, shape index: {}]
  %s1 = inlined_call_operand.vmem [shape: f32[8,6], index: 1, kind: input, shape index: {}]
  %s2 = inlined_call_operand.vmem [shape: f32[8,5], index: 2, kind: input, shape index: {}]
  %s3 = inlined_call_operand.hbm [shape: f32[1,3], index: 3, kind: output, shape index: {}]
  %s4 = sld [smem:[#allocation0]]
  $region22: #{tpu_custom_call.1} parent=0
    _
  %s6 = ssub.s32 1, %s4
  %s7 = scalar_select 0, %s6, %s4
  $region1: #{tpu_custom_call.1} parent=0
    #allocation2 [shape = 'u8[512]{0}', space=vmem, size = 0x400, scoped, tag = 'output window, operand 0, single buffered']
    #allocation3 [shape = 's32[1]{0}', space=sflag, size = 0x4, scoped, tag = 'scoped memory for tpu_custom_call.1']
    %8 = vsyncpa [#allocation3], 0
    // Predicated region
    $region2: #{tpu_custom_call.1} parent=1 // pred_check
      _
    $region3: #{tpu_custom_call.1} parent=1 // pred_check_branch
      %10 = sbr.rel (0) target = $region5
    $region4: #{tpu_custom_call.1} parent=1 // pred_region
      _
    $region5: #{tpu_custom_call.1} parent=1 // pred_fallthru
      _
    // Predicated region
    $region6: #{tpu_custom_call.1} parent=1 // pred_check
      _
    $region7: #{tpu_custom_call.1} parent=1 // pred_check_branch
      %12 = sbr.rel (0) target = $region9
    $region8: #{tpu_custom_call.1} parent=1 // pred_region
      _
    $region9: #{tpu_custom_call.1} parent=1 // pred_fallthru
      _
    // Predicated region
    $region10: #{tpu_custom_call.1} parent=1 // pred_check
      _
    $region11: #{tpu_custom_call.1} parent=1 // pred_check_branch
      %14 = sbr.rel (0) target = $region13
    $region12: #{tpu_custom_call.1} parent=1 // pred_region
      _
    $region13: #{tpu_custom_call.1} parent=1 // pred_fallthru
      _
    %v15 = vld [vmem:[%s2] sm:$0xff]
    %v16 = vld [vmem:[%s0] sm:$0xff]
    %v17 = vcvt.f32.s32.to.zero.pseudo %v15
    %v18 = vlaneseq
    %v19 = vand.u32 %v18, 127
    %20 = vset.pattern.permute.xlu0 2
    %21 = vperm.xlu0 %20, %v17
    %v22 = vpop.permute.xlu0 %21
    %vm23 = vcmp.eq.s32.totalorder %v19, %v22
    %v24 = vsel %vm23, %v16, 0.0
    %vm25 = vcmask 31744
    %v26 = vsel %vm25, %v24, 0.0
    %27 = vadd.xlane.f32.xlu0 %v26
    %v28 = vpop.xlane.xlu0 %27
    %v29 = vsel %vm25, %v16, -inf
    %30 = vmax.xlane.f32.xlu0 %v29
    %v31 = vpop.xlane.xlu0 %30
    %v32 = vsub.f32 %v16, %v31
    %v33 = vmul.f32 %v32, 1.442695
    %v34 = vpow.pop %v33
    %v35 = vsel %vm25, %v34, 0.0
    %36 = vadd.xlane.f32.xlu0 %v35
    %v37 = vpop.xlane.xlu0 %36
    %v38 = vlog2.pop %v37
    %v39 = vmul.f32 %v38, 0.6931472
    %v40 = vadd.f32 %v31, %v39
    %v41 = vsub.f32 %v40, %v28
    %v42 = vmul.f32 %v41, %v15
    %v43 = vlog2.pop %v15
    %v44 = vmul.f32 %v43, 0.6931472
    %v45 = vmax.f32 %v44, -100.0
    %v46 = vsub.f32 1.0, %v15
    %v47 = vlog2.pop %v46
    %v48 = vmul.f32 %v47, 0.6931472
    %v49 = vmax.f32 %v48, -100.0
    %51 = vrot.lane.b32.xlu0 %v45, 1
    %v52 = vpop.permute.xlu0 %51
    %v54 = vmul.f32 %v15, %v52
    %56 = vrot.lane.b32.xlu0 %v49, 1
    %v57 = vpop.permute.xlu0 %56
    %v59 = vmul.f32 %v46, %v57
    %v60 = vadd.f32 %v54, %v59
    %v61 = vsub.f32 0.0, %v60
    %63 = vrot.lane.b32.xlu0 %v15, 125
    %v64 = vpop.permute.xlu0 %63
    %v66 = vmul.f32 %v61, %v64
    %v67 = vld [vmem:[%s1] sm:$0xff]
    %68 = vset.pattern.permute.xlu0 3
    %69 = vperm.xlu0 %68, %v17
    %v70 = vpop.permute.xlu0 %69
    %vm71 = vcmp.eq.s32.totalorder %v19, %v70
    %v72 = vsel %vm71, %v67, 0.0
    %vm73 = vcmask 48128
    %v74 = vsel %vm73, %v72, 0.0
    %75 = vadd.xlane.f32.xlu0 %v74
    %v76 = vpop.xlane.xlu0 %75
    %v77 = vsel %vm73, %v67, -inf
    %78 = vmax.xlane.f32.xlu0 %v77
    %v79 = vpop.xlane.xlu0 %78
    %v80 = vsub.f32 %v67, %v79
    %v81 = vmul.f32 %v80, 1.442695
    %v82 = vpow.pop %v81
    %v83 = vsel %vm73, %v82, 0.0
    %84 = vadd.xlane.f32.xlu0 %v83
    %v85 = vpop.xlane.xlu0 %84
    %v86 = vlog2.pop %v85
    %v87 = vmul.f32 %v86, 0.6931472
    %v88 = vadd.f32 %v79, %v87
    %v89 = vsub.f32 %v88, %v76
    %v90 = vmul.f32 %v89, %v15
    %vm91 = vcmask 39968
    %v92 = vsel %vm91, %v42, 0.0
    %v93 = vrot.slane %v92, 4
    %v94 = vadd.f32 %v92, %v93
    %v95 = vrot.slane %v94, 2
    %v96 = vadd.f32 %v94, %v95
    %v97 = vrot.slane %v96, 1
    %v98 = vadd.f32 %v96, %v97
    %100 = vrot.lane.b32.xlu0 %v98, 124
    %v101 = vpop.permute.xlu0 %100
    %vm103 = vcmask 0
    %104 = vst.msk [vmem:[#allocation2] sm:$0x1] %vm103, %v101
    %vm105 = vcmask 15368
    %v106 = vsel %vm105, %v66, 0.0
    %v107 = vrot.slane %v106, 4
    %v108 = vadd.f32 %v106, %v107
    %v109 = vrot.slane %v108, 2
    %v110 = vadd.f32 %v108, %v109
    %v111 = vrot.slane %v110, 1
    %v112 = vadd.f32 %v110, %v111
    %vm113 = vcmask 8200
    %114 = vst.msk [vmem:[#allocation2] sm:$0x1] %vm113, %v112
    %v115 = vsel %vm91, %v90, 0.0
    %v116 = vrot.slane %v115, 4
    %v117 = vadd.f32 %v115, %v116
    %v118 = vrot.slane %v117, 2
    %v119 = vadd.f32 %v117, %v118
    %v120 = vrot.slane %v119, 1
    %v121 = vadd.f32 %v119, %v120
    %123 = vrot.lane.b32.xlu0 %v121, 126
    %v124 = vpop.permute.xlu0 %123
    %vm126 = vcmask 16400
    %127 = vst.msk [vmem:[#allocation2] sm:$0x1] %vm126, %v124
    // Predicated region
    $region14: #{tpu_custom_call.1} parent=1 // pred_check
      _
    $region15: #{tpu_custom_call.1} parent=1 // pred_check_branch
      %129 = sbr.rel (0) target = $region17
    $region16: #{tpu_custom_call.1} parent=1 // pred_region
      %s131 = ssub.s32 16, 16
      %132 = vsyncadd [#allocation3], %s131
      %s134 = sshll.u32 [#allocation2], 4
      %s135 = int_to_ptr.vmem [resolvable:$true] %s134
      %137 = dma.vmem_to_hbm [thread:$0]  %s135, 16, %s3, [#allocation3]
    $region17: #{tpu_custom_call.1} parent=1 // pred_fallthru
      _
    // Predicated region
    $region18: #{tpu_custom_call.1} parent=1 // pred_check
      _
    $region19: #{tpu_custom_call.1} parent=1 // pred_check_branch
      %139 = sbr.rel (0) target = $region21
    $region20: #{tpu_custom_call.1} parent=1 // pred_region
      %140 = dma.done [#allocation3], 16
    $region21: #{tpu_custom_call.1} parent=1 // pred_fallthru
      _
    %141 = vsyncpa [#allocation3], 1

</llo_original>
